<compile_context>
chip_gen: v7x
topology: tpu7x:2x2x1
jax: 0.10.0
libtpu: 0.0.40
codegen_flags: <defaults>
</compile_context>

<pallas_src>
import numpy as np
import jax
import jax.numpy as jnp
from jax.experimental import pallas as pl
from jax.experimental.pallas import tpu as pltpu

# ---------------- config (small, consistent with the module) ----------------
IMG_SIZE = 128
STRIDE = 8
NUM_CLASSES = 20
HEAD_DIM = 64
TOPK = 100
NMS_THRESH = 0.6
USE_NMS = True

FH = FW = IMG_SIZE // STRIDE          # feature-map spatial size (16 x 16)
HW = FH * FW                          # number of anchors / spatial positions (256)
HW_TILE = 128                         # HW tile per grid step (lane-dense output)
DEFAULT_SCALE_CLAMP = float(np.log(1000.0))

BR = 2 * HEAD_DIM                     # fused branch width (cls_feat | reg_feat) = 128
LANES = 128                           # slab lane width
HEAD_N = NUM_CLASSES + 4 + 1          # hmp(20) | reg(4) | iou(1) = 25
HEAD_N_PAD = 32                       # padded fused head width
OUT_ROWS = 8                          # packed output rows: score, label, x1,y1,x2,y2, pad, pad
SCALE = float(STRIDE) / float(IMG_SIZE)

assert HW % HW_TILE == 0, "HW must tile evenly"
assert FW & (FW - 1) == 0, "in-kernel anchor gen assumes power-of-two fmp width"
FW_SHIFT = int(np.log2(FW))

# packed-slab row layout (all transposed weights + biases in ONE operand, 128 lanes)
#   rows [0, 128)  : cols 0:64 = w_branch^T ([BR, C]),  col 64 = b_branch column
#   rows [128, 160): w_head^T block matrix  ([32, 128])
#   rows [160, 192): col 0 = b_head column  ([32, 1] used)
ROW_WHD_T = BR                        # 128
ROW_BHD = BR + HEAD_N_PAD             # 160
SLAB_ROWS = BR + 2 * HEAD_N_PAD       # 192


# --------------------------- the Pallas kernel -------------------------------
def ccdet_kernel(feat_ref, slab_ref, out_ref):
    f = feat_ref[...]                                               # [64, T]  (T = HW_TILE)
    T = f.shape[1]

    # static slab views (one resident DMA stream, constant index_map)
    w_br_t = slab_ref[0:BR, 0:HEAD_DIM]                             # [128, 64]
    b_br   = slab_ref[0:BR, HEAD_DIM:HEAD_DIM + 1]                  # [128, 1]
    w_hd_t = slab_ref[ROW_WHD_T:ROW_WHD_T + HEAD_N_PAD, :]          # [ 32, 128]
    b_hd   = slab_ref[ROW_BHD:SLAB_ROWS, 0:1]                       # [ 32, 1]

    # fused decoupled-head branches: (cls_feat | reg_feat) stacked on sublanes,
    # HW on lanes -> no activation transpose anywhere.
    branch = jnp.dot(w_br_t, f, preferred_element_type=jnp.float32) + b_br
    branch = jnp.maximum(branch, 0.0)                               # [128, T]

    # fused prediction heads: hmp | reg | iou via one block-matrix matmul
    head = jnp.dot(w_hd_t, branch, preferred_element_type=jnp.float32) + b_hd   # [32, T]
    hmp = head[0:NUM_CLASSES, :]                                    # [20, T]
    reg = head[NUM_CLASSES:NUM_CLASSES + 4, :]                      # [ 4, T]
    iou = head[NUM_CLASSES + 4:NUM_CLASSES + 5, :]                  # [ 1, T]

    # labels/scores: argmax over sqrt(sigmoid(hmp)*sigmoid(iou)) == argmax over
    # raw hmp logits (strictly monotone; iou constant per anchor), so the
    # transcendentals only run on the [1, T] maxima.
    hmax = jnp.max(hmp, axis=0, keepdims=True)                      # [1, T]
    row = jax.lax.broadcasted_iota(jnp.int32, hmp.shape, 0)
    lab = jnp.min(jnp.where(hmp == hmax, row, jnp.int32(NUM_CLASSES)),
                  axis=0, keepdims=True)                            # first argmax, [1, T]
    sig_h = 1.0 / (1.0 + jnp.exp(-hmax))
    sig_i = 1.0 / (1.0 + jnp.exp(-iou))
    score = jnp.sqrt(sig_h * sig_i)                                 # [1, T]

    # decode_boxes: [wl, ht, wr, hb] -> [x1, y1, x2, y2]; anchors from lane iota
    reg_e = jnp.exp(jnp.minimum(reg, DEFAULT_SCALE_CLAMP))          # [4, T]
    lane = jax.lax.broadcasted_iota(jnp.int32, (1, T), 1)
    ridx = pl.program_id(0) * T + lane                              # global anchor index
    anc_x = jnp.bitwise_and(ridx, FW - 1).astype(jnp.float32)       # r % FW
    anc_y = jnp.right_shift(ridx, FW_SHIFT).astype(jnp.float32)     # r // FW
    x1 = anc_x - reg_e[0:1, :]
    y1 = anc_y - reg_e[1:2, :]
    x2 = anc_x + reg_e[2:3, :]
    y2 = anc_y + reg_e[3:4, :]
    bbox = jnp.concatenate([x1, y1, x2, y2], axis=0)                # [4, T]
    bbox = jnp.clip(bbox * jnp.float32(SCALE), 0.0, 1.0)            # *stride / img_size

    # single lane-dense packed store: [8, T] (score, label, bbox, 2 pad rows)
    out_ref[...] = jnp.concatenate(
        [score, lab.astype(jnp.float32), bbox, jnp.zeros((2, T), jnp.float32)],
        axis=0)


def ccdet_head_pallas(feat_chw, slab):
    """feat_chw: [HEAD_DIM, HW] f32 (flattened NCHW, no transpose anywhere)."""
    n_tiles = HW // HW_TILE
    cost = pl.CostEstimate(
        flops=2 * HW * HEAD_DIM * BR + 2 * HW * BR * HEAD_N_PAD,
        transcendentals=7 * HW,
        bytes_accessed=(HW * HEAD_DIM + SLAB_ROWS * LANES + OUT_ROWS * HW) * 4,
    )
    return pl.pallas_call(
        ccdet_kernel,
        out_shape=jax.ShapeDtypeStruct((OUT_ROWS, HW), jnp.float32),
        grid=(n_tiles,),
        in_specs=[
            pl.BlockSpec((HEAD_DIM, HW_TILE), lambda i: (0, i)),     # feat tile per step
            pl.BlockSpec((SLAB_ROWS, LANES), lambda i: (0, 0)),      # slab resident
        ],
        out_specs=pl.BlockSpec((OUT_ROWS, HW_TILE), lambda i: (0, i)),
        compiler_params=pltpu.CompilerParams(
            dimension_semantics=("parallel",)),                      # v7x: 2 TCs split tiles
        cost_estimate=cost,
    )(feat_chw, slab)


# ------------------------------ glue / wrapper --------------------------------
def pack_slab(p):
    """Pack all (transposed) weights & biases into one [192, 128] f32 slab (host, once)."""
    w_br = jnp.concatenate([p["w_cls"], p["w_regf"]], axis=1)              # [64, 128]
    b_br = jnp.concatenate([p["b_cls"], p["b_regf"]], axis=1)              # [1, 128]
    w_hd = jnp.zeros((BR, HEAD_N_PAD), jnp.float32)
    w_hd = w_hd.at[:HEAD_DIM, 0:NUM_CLASSES].set(p["w_hmp"])               # cls_feat -> hmp
    w_hd = w_hd.at[HEAD_DIM:, NUM_CLASSES:NUM_CLASSES + 4].set(p["w_reg"])        # reg_feat -> reg
    w_hd = w_hd.at[HEAD_DIM:, NUM_CLASSES + 4:NUM_CLASSES + 5].set(p["w_iou"])    # reg_feat -> iou
    b_hd = jnp.zeros((1, HEAD_N_PAD), jnp.float32)
    b_hd = b_hd.at[:, 0:NUM_CLASSES].set(p["b_hmp"])
    b_hd = b_hd.at[:, NUM_CLASSES:NUM_CLASSES + 4].set(p["b_reg"])
    b_hd = b_hd.at[:, NUM_CLASSES + 4:NUM_CLASSES + 5].set(p["b_iou"])

    # channel-major (transposed) layout, built once off the hot path
    block0 = jnp.zeros((BR, LANES), jnp.float32)
    block0 = block0.at[:, 0:HEAD_DIM].set(w_br.T)                          # w_branch^T [128,64]
    block0 = block0.at[:, HEAD_DIM].set(b_br[0])                           # b_branch column
    block1 = w_hd.T                                                        # [32, 128]
    block2 = jnp.zeros((HEAD_N_PAD, LANES), jnp.float32)
    block2 = block2.at[:, 0].set(b_hd[0])                                  # b_head column
    return jnp.concatenate([block0, block1, block2], axis=0)               # [192, 128]


def generate_anchors():
    ys, xs = jnp.meshgrid(jnp.arange(FH), jnp.arange(FW), indexing="ij")
    return jnp.stack([xs, ys], axis=-1).astype(jnp.float32).reshape(-1, 2)


def ccdet_decode(x, slab):
    """x: [1, HEAD_DIM, FH, FW] (NCHW top feature) -> per-anchor (scores, labels, bboxes)."""
    feat_chw = x[0].reshape(HEAD_DIM, HW)            # free reshape, no transpose op
    packed = ccdet_head_pallas(feat_chw, slab)       # [8, HW]
    scores = packed[0]
    labels = packed[1].astype(jnp.int32)             # small exact ints stored as f32
    bboxes = packed[2:6].T                           # [HW, 4]  (tiny, outside kernel)
    return scores, labels, bboxes


def ccdet_inference(x, slab):
    scores, labels, bboxes = ccdet_decode(x, slab)
    # top-k selection (glue, matches `if scores.shape[0] > self.topk`)
    if scores.shape[0] > TOPK:
        scores, idx = jax.lax.top_k(scores, TOPK)
        labels = labels[idx]
        bboxes = bboxes[idx]
    return scores, labels, bboxes


def class_wise_nms(dets, scores, nms_thresh):
    """Pure NumPy NMS, identical to CCDet.nms (host-side)."""
    x1, y1, x2, y2 = dets[:, 0], dets[:, 1], dets[:, 2], dets[:, 3]
    areas = (x2 - x1) * (y2 - y1)
    order = scores.argsort()[::-1]
    keep = []
    while order.size > 0:
        i = order[0]
        keep.append(i)
        xx1 = np.maximum(x1[i], x1[order[1:]])
        yy1 = np.maximum(y1[i], y1[order[1:]])
        xx2 = np.minimum(x2[i], x2[order[1:]])
        yy2 = np.minimum(y2[i], y2[order[1:]])
        w = np.maximum(1e-10, xx2 - xx1)
        h = np.maximum(1e-10, yy2 - yy1)
        inter = w * h
        ovr = inter / (areas[i] + areas[order[1:]] - inter + 1e-10)
        inds = np.where(ovr <= nms_thresh)[0]
        order = order[inds + 1]
    return keep


def make_params(key):
    ks = jax.random.split(key, 12)
    def w(k, shape, scale=0.05):
        return jax.random.normal(k, shape, jnp.float32) * scale
    return {
        "w_cls":  w(ks[0], (HEAD_DIM, HEAD_DIM)),
        "b_cls":  w(ks[1], (1, HEAD_DIM)),
        "w_regf": w(ks[2], (HEAD_DIM, HEAD_DIM)),
        "b_regf": w(ks[3], (1, HEAD_DIM)),
        "w_hmp":  w(ks[4], (HEAD_DIM, NUM_CLASSES)),
        "b_hmp":  w(ks[5], (1, NUM_CLASSES)),
        "w_reg":  w(ks[6], (HEAD_DIM, 4)),
        "b_reg":  w(ks[7], (1, 4)),
        "w_iou":  w(ks[8], (HEAD_DIM, 1)),
        "b_iou":  w(ks[9], (1, 1)),
    }


def reference_jax(feat2d, p, anchors):
    """Unfused pure-JAX reference of the same math (validates the fused kernel)."""
    cls_feat = jnp.maximum(feat2d @ p["w_cls"] + p["b_cls"], 0.0)
    reg_feat = jnp.maximum(feat2d @ p["w_regf"] + p["b_regf"], 0.0)
    hmp = cls_feat @ p["w_hmp"] + p["b_hmp"]
    reg = reg_feat @ p["w_reg"] + p["b_reg"]
    iou = reg_feat @ p["w_iou"] + p["b_iou"]
    s = jnp.sqrt(jax.nn.sigmoid(hmp) * jax.nn.sigmoid(iou))
    scores = jnp.max(s, axis=-1)
    labels = jnp.argmax(s, axis=-1).astype(jnp.int32)
    reg_e = jnp.exp(jnp.minimum(reg, DEFAULT_SCALE_CLAMP))
    bbox = jnp.concatenate([anchors - reg_e[:, :2], anchors + reg_e[:, 2:]], -1)
    bbox = jnp.clip(bbox * STRIDE / IMG_SIZE, 0.0, 1.0)
    return scores, labels, bbox


if __name__ == "__main__":
    key = jax.random.PRNGKey(0)
    k_x, k_p = jax.random.split(key)
    x = jax.random.normal(k_x, (1, HEAD_DIM, FH, FW), jnp.float32)   # [1, C, H, W]
    params = make_params(k_p)
    slab = pack_slab(params)                                         # packed once, off hot path
    anchors = generate_anchors()

    # --- correctness: compare the full per-anchor kernel output vs unfused ref ---
    k_scores, k_labels, k_bboxes = jax.jit(ccdet_decode)(x, slab)
    jax.block_until_ready((k_scores, k_labels, k_bboxes))

    feat2d = jnp.transpose(x[0], (1, 2, 0)).reshape(HW, HEAD_DIM)
    r_s, r_l, r_b = reference_jax(feat2d, params, anchors)
    np.testing.assert_allclose(np.asarray(k_scores), np.asarray(r_s), rtol=1e-5, atol=1e-5)
    np.testing.assert_array_equal(np.asarray(k_labels), np.asarray(r_l))
    np.testing.assert_allclose(np.asarray(k_bboxes), np.asarray(r_b), rtol=1e-5, atol=1e-5)

    # --- full inference path (top-k + host-side class-wise NMS, like the module) ---
    scores, labels, bboxes = jax.jit(ccdet_inference)(x, slab)
    jax.block_until_ready((scores, labels, bboxes))

    scores_np = np.asarray(scores)
    labels_np = np.asarray(labels)
    bboxes_np = np.asarray(bboxes)
    if USE_NMS:
        keep = np.zeros(len(bboxes_np), dtype=np.int64)
        for i in range(NUM_CLASSES):
            inds = np.where(labels_np == i)[0]
            if len(inds) == 0:
                continue
            c_keep = class_wise_nms(bboxes_np[inds], scores_np[inds], NMS_THRESH)
            keep[inds[c_keep]] = 1
        keep = np.where(keep > 0)
        bboxes_np = bboxes_np[keep]
        scores_np = scores_np[keep]
        labels_np = labels_np[keep]

    print("KERNEL_OK")
</pallas_src>

<mosaic_0001>
module attributes {stable_mosaic.version = 11 : i64} {
  func.func @ccdet_kernel(%arg0: i32, %arg1: memref<64x128xf32, #tpu.memory_space<vmem>>, %arg2: memref<192x128xf32, #tpu.memory_space<vmem>>, %arg3: memref<8x128xf32, #tpu.memory_space<vmem>>) attributes {dimension_semantics = [#tpu.dimension_semantics<parallel>], iteration_bounds = array<i64: 2>, scalar_prefetch = 0 : i64, scratch_operands = 0 : i64, tpu.core_type = #tpu.core_type<tc>, window_params = [{transform_indices = @transform_0, window_bounds = array<i64: 64, 128>}, {pipeline_mode = #tpu.pipeline_mode<synchronous>, transform_indices = @transform_1, window_bounds = array<i64: 192, 128>}, {transform_indices = @transform_2, window_bounds = array<i64: 8, 128>}]} {
    %c0 = arith.constant 0 : index
    %c0_0 = arith.constant 0 : index
    %0 = vector.load %arg1[%c0, %c0_0] : memref<64x128xf32, #tpu.memory_space<vmem>>, vector<64x128xf32>
    %c0_1 = arith.constant 0 : index
    %c0_2 = arith.constant 0 : index
    %1 = vector.load %arg2[%c0_1, %c0_2] : memref<192x128xf32, #tpu.memory_space<vmem>>, vector<128x64xf32>
    %c0_3 = arith.constant 0 : index
    %c64 = arith.constant 64 : index
    %2 = vector.load %arg2[%c0_3, %c64] : memref<192x128xf32, #tpu.memory_space<vmem>>, vector<128x1xf32>
    %c128 = arith.constant 128 : index
    %c0_4 = arith.constant 0 : index
    %3 = vector.load %arg2[%c128, %c0_4] : memref<192x128xf32, #tpu.memory_space<vmem>>, vector<32x128xf32>
    %c160 = arith.constant 160 : index
    %c0_5 = arith.constant 0 : index
    %4 = vector.load %arg2[%c160, %c0_5] : memref<192x128xf32, #tpu.memory_space<vmem>>, vector<32x1xf32>
    %cst = arith.constant dense<0.000000e+00> : vector<128x128xf32>
    %5 = tpu.matmul %1, %0, %cst {dimension_numbers = #tpu.dot_dimension_numbers<[1], [0], [0], [1], [0, 0, 1, 1], [], []>} : vector<128x64xf32>, vector<64x128xf32>, vector<128x128xf32> -> vector<128x128xf32>
    %6 = vector.broadcast %2 : vector<128x1xf32> to vector<128x128xf32>
    %7 = arith.addf %5, %6 : vector<128x128xf32>
    %cst_6 = arith.constant 0.000000e+00 : f32
    %8 = vector.broadcast %cst_6 : f32 to vector<128x128xf32>
    %9 = arith.maximumf %7, %8 : vector<128x128xf32>
    %cst_7 = arith.constant dense<0.000000e+00> : vector<32x128xf32>
    %10 = tpu.matmul %3, %9, %cst_7 {dimension_numbers = #tpu.dot_dimension_numbers<[1], [0], [0], [1], [0, 0, 1, 1], [], []>} : vector<32x128xf32>, vector<128x128xf32>, vector<32x128xf32> -> vector<32x128xf32>
    %11 = vector.broadcast %4 : vector<32x1xf32> to vector<32x128xf32>
    %12 = arith.addf %10, %11 : vector<32x128xf32>
    %13 = vector.extract_strided_slice %12 {offsets = [0, 0], sizes = [20, 128], strides = [1, 1]} : vector<32x128xf32> to vector<20x128xf32>
    %14 = vector.extract_strided_slice %12 {offsets = [20, 0], sizes = [4, 128], strides = [1, 1]} : vector<32x128xf32> to vector<4x128xf32>
    %15 = vector.extract_strided_slice %12 {offsets = [24, 0], sizes = [1, 128], strides = [1, 1]} : vector<32x128xf32> to vector<1x128xf32>
    %cst_8 = arith.constant dense<0xFF800000> : vector<128xf32>
    %16 = vector.multi_reduction <maximumf>, %13, %cst_8 [0] : vector<20x128xf32> to vector<128xf32>
    %17 = vector.shape_cast %16 : vector<128xf32> to vector<1x128xf32>
    %18 = tpu.iota {dimensions = array<i32: 0>} : vector<20x128xi32>
    %19 = vector.broadcast %17 : vector<1x128xf32> to vector<20x128xf32>
    %20 = arith.cmpf oeq, %13, %19 : vector<20x128xf32>
    %c20_i32 = arith.constant 20 : i32
    %21 = vector.broadcast %c20_i32 : i32 to vector<20x128xi32>
    %22 = arith.select %20, %18, %21 : vector<20x128xi1>, vector<20x128xi32>
    %cst_9 = arith.constant dense<2147483647> : vector<128xi32>
    %23 = vector.multi_reduction <minsi>, %22, %cst_9 [0] : vector<20x128xi32> to vector<128xi32>
    %24 = vector.shape_cast %23 : vector<128xi32> to vector<1x128xi32>
    %cst_10 = arith.constant 0.000000e+00 : f32
    %25 = vector.broadcast %cst_10 : f32 to vector<1x128xf32>
    %26 = arith.subf %25, %17 : vector<1x128xf32>
    %27 = math.exp %26 : vector<1x128xf32>
    %cst_11 = arith.constant 1.000000e+00 : f32
    %28 = vector.broadcast %cst_11 : f32 to vector<1x128xf32>
    %29 = arith.addf %28, %27 : vector<1x128xf32>
    %cst_12 = arith.constant 1.000000e+00 : f32
    %30 = vector.broadcast %cst_12 : f32 to vector<1x128xf32>
    %31 = arith.divf %30, %29 : vector<1x128xf32>
    %cst_13 = arith.constant 0.000000e+00 : f32
    %32 = vector.broadcast %cst_13 : f32 to vector<1x128xf32>
    %33 = arith.subf %32, %15 : vector<1x128xf32>
    %34 = math.exp %33 : vector<1x128xf32>
    %cst_14 = arith.constant 1.000000e+00 : f32
    %35 = vector.broadcast %cst_14 : f32 to vector<1x128xf32>
    %36 = arith.addf %35, %34 : vector<1x128xf32>
    %cst_15 = arith.constant 1.000000e+00 : f32
    %37 = vector.broadcast %cst_15 : f32 to vector<1x128xf32>
    %38 = arith.divf %37, %36 : vector<1x128xf32>
    %39 = arith.mulf %31, %38 : vector<1x128xf32>
    %40 = math.sqrt %39 : vector<1x128xf32>
    %cst_16 = arith.constant 6.90775537 : f32
    %41 = vector.broadcast %cst_16 : f32 to vector<4x128xf32>
    %42 = arith.minimumf %14, %41 : vector<4x128xf32>
    %43 = math.exp %42 : vector<4x128xf32>
    %44 = tpu.iota {dimensions = array<i32: 1>} : vector<1x128xi32>
    %c128_i32 = arith.constant 128 : i32
    %45 = arith.muli %arg0, %c128_i32 : i32
    %46 = vector.broadcast %45 : i32 to vector<1x128xi32>
    %47 = arith.addi %46, %44 : vector<1x128xi32>
    %c15_i32 = arith.constant 15 : i32
    %48 = vector.broadcast %c15_i32 : i32 to vector<1x128xi32>
    %49 = arith.andi %47, %48 : vector<1x128xi32>
    %50 = arith.sitofp %49 : vector<1x128xi32> to vector<1x128xf32>
    %c4_i32 = arith.constant 4 : i32
    %51 = vector.broadcast %c4_i32 : i32 to vector<1x128xi32>
    %52 = arith.shrsi %47, %51 : vector<1x128xi32>
    %53 = arith.sitofp %52 : vector<1x128xi32> to vector<1x128xf32>
    %54 = vector.extract_strided_slice %43 {offsets = [0, 0], sizes = [1, 128], strides = [1, 1]} : vector<4x128xf32> to vector<1x128xf32>
    %55 = arith.subf %50, %54 : vector<1x128xf32>
    %56 = vector.extract_strided_slice %43 {offsets = [1, 0], sizes = [1, 128], strides = [1, 1]} : vector<4x128xf32> to vector<1x128xf32>
    %57 = arith.subf %53, %56 : vector<1x128xf32>
    %58 = vector.extract_strided_slice %43 {offsets = [2, 0], sizes = [1, 128], strides = [1, 1]} : vector<4x128xf32> to vector<1x128xf32>
    %59 = arith.addf %50, %58 : vector<1x128xf32>
    %60 = vector.extract_strided_slice %43 {offsets = [3, 0], sizes = [1, 128], strides = [1, 1]} : vector<4x128xf32> to vector<1x128xf32>
    %61 = arith.addf %53, %60 : vector<1x128xf32>
    %62 = tpu.concatenate %55, %57, %59, %61 in 0 : vector<1x128xf32>, vector<1x128xf32>, vector<1x128xf32>, vector<1x128xf32> -> vector<4x128xf32>
    %cst_17 = arith.constant 6.250000e-02 : f32
    %63 = vector.broadcast %cst_17 : f32 to vector<4x128xf32>
    %64 = arith.mulf %62, %63 : vector<4x128xf32>
    %cst_18 = arith.constant 0.000000e+00 : f32
    %cst_19 = arith.constant 1.000000e+00 : f32
    %65 = vector.broadcast %cst_18 : f32 to vector<4x128xf32>
    %66 = arith.maximumf %65, %64 : vector<4x128xf32>
    %67 = vector.broadcast %cst_19 : f32 to vector<4x128xf32>
    %68 = arith.minimumf %67, %66 : vector<4x128xf32>
    %69 = arith.sitofp %24 : vector<1x128xi32> to vector<1x128xf32>
    %cst_20 = arith.constant 0.000000e+00 : f32
    %70 = vector.broadcast %cst_20 : f32 to vector<2x128xf32>
    %71 = tpu.concatenate %40, %69, %68, %70 in 0 : vector<1x128xf32>, vector<1x128xf32>, vector<4x128xf32>, vector<2x128xf32> -> vector<8x128xf32>
    %c0_21 = arith.constant 0 : index
    %c0_22 = arith.constant 0 : index
    %72 = vector.load %arg3[%c0_21, %c0_22] : memref<8x128xf32, #tpu.memory_space<vmem>>, vector<8x128xf32>
    tpu.vector_store %arg3[%c0_21, %c0_22], %71 {strides = array<i32>} : memref<8x128xf32, #tpu.memory_space<vmem>>, vector<8x128xf32>,
    return
  }
  func.func @transform_0(%arg0: i32) -> (i32, i32) {
    %c0_i32 = arith.constant 0 : i32
    %c0_i32_0 = arith.constant 0 : i32
    return %c0_i32, %arg0 : i32, i32
  }
  func.func @transform_1(%arg0: i32) -> (i32, i32) {
    %c0_i32 = arith.constant 0 : i32
    %c0_i32_0 = arith.constant 0 : i32
    %c0_i32_1 = arith.constant 0 : i32
    return %c0_i32, %c0_i32_0 : i32, i32
  }
  func.func @transform_2(%arg0: i32) -> (i32, i32) {
    %c0_i32 = arith.constant 0 : i32
    %c0_i32_0 = arith.constant 0 : i32
    return %c0_i32, %arg0 : i32, i32
  }
}

</mosaic_0001>

<llo_original>
// kernel: ccdet_decode.1
$region0: #{ccdet_decode.1}
  #allocation0 [shape = 'u32[]', space=smem, size = 0x4, offset = 0x4, fixed_abs, tag = 'smem constant byte address 0x4 - core index']
  #allocation1 [shape = 'u32[144,128]{1,0:T(1,128)}', space=vmem, size = 0x12000, scoped, tag = 'internal scratch']
  %s0 = inlined_call_operand.vmem [shape: f32[64,256], index: 0, kind: input, shape index: {}]
  %s1 = inlined_call_operand.vmem [shape: f32[192,128], index: 1, kind: input, shape index: {}]
  %s2 = inlined_call_operand.vmem [shape: f32[8,256], index: 2, kind: output, shape index: {}]
  %s3 = sld [smem:[#allocation0]]
  $region79: #{ccdet_decode.1} parent=0
    _
  %s5 = ssub.s32 1, %s3
  %s6 = scalar_select 0, %s5, %s3
  $region1: #{ccdet_decode.1} parent=0
    #allocation2 [shape = 'u8[65536]{0}', space=vmem, size = 0x10000, scoped, tag = 'input window, operand 0']
    loop: start=0, step=1, limit=4
    $region2: #{ccdet_decode.1} parent=1 // loop_pre_header
      _
    $region3: #{ccdet_decode.1} parent=1 // loop_header
      %s8 = sphi 0, %s12
      %p9 = scmp.ge.s32.totalorder %s8, 4
      %s18 = sphi 0, %s20
      %s21 = sphi 0, %s18
      %s22 = sphi 0, %s21
      %s38 = sphi 0, %s22
      %s42 = sphi 0, %s42
      %s44 = sphi 0, %s42
      %s45 = sphi 0, %s44
      %s59 = sphi 0, %s45
      %s65 = sphi 0, %s67
      %s68 = sphi 0, %s65
      %s69 = sphi 0, %s68
      %s85 = sphi 0, %s69
    $region4: #{ccdet_decode.1} parent=1 // loop_header_branch
      %11 = sbr.rel (%p9) target = $region8
    $region5: #{ccdet_decode.1} parent=1 // loop_body
      %s13 = ssub.s32 %s8, 1
      %s14 = ssub.s32 %s8, 2
      %s15 = sadd.s32 %s8, 1
      %s16 = ssub.s32 %s8, %s15
      %p17 = scmp.eq.s32.totalorder %s16, 0
      %s19 = sadd.s32 %s18, 1
      %s20 = scalar_select %p17, %s18, %s19
      %p23 = pneg %p17
      %p24 = scmp.eq.s32.totalorder %s8, 1
      %p25 = por %p23, %p24
      %p26 = scmp.ne.s32.totalorder %s18, %s21
      %p27 = scmp.eq.s32.totalorder %s8, 0
      %p28 = por %p26, %p27
      %p29 = scmp.ne.s32.totalorder %s18, %s21
      %p30 = scmp.eq.s32.totalorder %s13, 1
      %p31 = por %p29, %p30
      %p32 = scmp.ne.s32.totalorder %s21, %s22
      %p33 = scmp.eq.s32.totalorder %s13, 0
      %p34 = por %p32, %p33
      %p35 = scmp.ne.s32.totalorder %s21, %s22
      %p36 = scmp.eq.s32.totalorder %s14, 1
      %p37 = por %p35, %p36
      %p39 = scmp.ne.s32.totalorder %s22, %s38
      %p40 = scmp.eq.s32.totalorder %s14, 0
      %p41 = por %p39, %p40
      %s43 = sadd.s32 %s42, 1
      %p46 = scmp.eq.s32.totalorder %s8, 1
      %p47 = scmp.ne.s32.totalorder %s42, %s44
      %p48 = scmp.eq.s32.totalorder %s8, 0
      %p49 = por %p47, %p48
      %p50 = scmp.ne.s32.totalorder %s42, %s44
      %p51 = scmp.eq.s32.totalorder %s13, 1
      %p52 = por %p50, %p51
      %p53 = scmp.ne.s32.totalorder %s44, %s45
      %p54 = scmp.eq.s32.totalorder %s13, 0
      %p55 = por %p53, %p54
      %p56 = scmp.ne.s32.totalorder %s44, %s45
      %p57 = scmp.eq.s32.totalorder %s14, 1
      %p58 = por %p56, %p57
      %p60 = scmp.ne.s32.totalorder %s45, %s59
      %p61 = scmp.eq.s32.totalorder %s14, 0
      %p62 = por %p60, %p61
      %s63 = ssub.s32 %s8, %s15
      %p64 = scmp.eq.s32.totalorder %s63, 0
      %s66 = sadd.s32 %s65, 1
      %s67 = scalar_select %p64, %s65, %s66
      %p70 = pneg %p64
      %p71 = scmp.eq.s32.totalorder %s8, 1
      %p72 = por %p70, %p71
      %p73 = scmp.ne.s32.totalorder %s65, %s68
      %p74 = scmp.eq.s32.totalorder %s8, 0
      %p75 = por %p73, %p74
      %p76 = scmp.ne.s32.totalorder %s65, %s68
      %p77 = scmp.eq.s32.totalorder %s13, 1
      %p78 = por %p76, %p77
      %p79 = scmp.ne.s32.totalorder %s68, %s69
      %p80 = scmp.eq.s32.totalorder %s13, 0
      %p81 = por %p79, %p80
      %p82 = scmp.ne.s32.totalorder %s68, %s69
      %p83 = scmp.eq.s32.totalorder %s14, 1
      %p84 = por %p82, %p83
      %p86 = scmp.ne.s32.totalorder %s69, %s85
      %p87 = scmp.eq.s32.totalorder %s14, 0
      %p88 = por %p86, %p87
      %p89 = scmp.le.s32.totalorder 1, %s8
      %p90 = scmp.lt.s32.totalorder %s8, 3
      %p91 = pnand %p89, %p90
      %p92 = pneg %p91
      // Predicated region
      $region9: #{ccdet_decode.1} parent=5 // pred_check
        _
      $region10: #{ccdet_decode.1} parent=5 // pred_check_branch
        %94 = sbr.rel (%p91) target = $region12
      $region11: #{ccdet_decode.1} parent=5 // pred_region
        %s95 = ssub.s32 %s8, 1
        // Predicated region
        $region13: #{ccdet_decode.1} parent=11 // pred_check
          %p96 = pneg %p55
        $region14: #{ccdet_decode.1} parent=11 // pred_check_branch
          %98 = sbr.rel (%p96) target = $region16
        $region15: #{ccdet_decode.1} parent=11 // pred_region
          _
        $region16: #{ccdet_decode.1} parent=11 // pred_fallthru
          _
      $region12: #{ccdet_decode.1} parent=5 // pred_fallthru
        _
      %p99 = scmp.lt.s32.totalorder %s8, 2
      // Predicated region
      $region17: #{ccdet_decode.1} parent=5 // pred_check
        %p100 = pneg %p99
      $region18: #{ccdet_decode.1} parent=5 // pred_check_branch
        %102 = sbr.rel (%p100) target = $region20
      $region19: #{ccdet_decode.1} parent=5 // pred_region
        // Predicated region
        $region21: #{ccdet_decode.1} parent=19 // pred_check
          %p103 = pneg %p28
        $region22: #{ccdet_decode.1} parent=19 // pred_check_branch
          %105 = sbr.rel (%p103) target = $region24
        $region23: #{ccdet_decode.1} parent=19 // pred_region
          %s106 = sand.u32 %s18, 1
          %s107 = sand.u32 %s18, 1
          %s108 = smul.addr %s107, 64
          %s109 = scalar_lea.vmem [#allocation2], %s108
          %s110 = smul.addr %s8, 8
          %s111 = scalar_lea.vmem %s0, %s110
          // Predicated region
          $region25: #{ccdet_decode.1} parent=23 // pred_check
            _
          $region26: #{ccdet_decode.1} parent=23 // pred_check_branch
            %113 = sbr.rel (0) target = $region28
          $region27: #{ccdet_decode.1} parent=23 // pred_region
            // Predicated region
            $region29: #{ccdet_decode.1} parent=27 // pred_check
              _
            $region30: #{ccdet_decode.1} parent=27 // pred_check_branch
              %115 = sbr.rel (0) target = $region32
            $region31: #{ccdet_decode.1} parent=27 // pred_region
              // Predicated region
              $region44: #{ccdet_decode.1} parent=31 // pred_check
                _
              $region45: #{ccdet_decode.1} parent=31 // pred_check_branch
                %144 = sbr.rel (0) target = $region47
              $region46: #{ccdet_decode.1} parent=31 // pred_region
                loop: start=0, step=1, limit=1
                $region48: #{ccdet_decode.1} parent=46 // loop_pre_header
                  _
                $region49: #{ccdet_decode.1} parent=46 // loop_header
                  %s146 = sphi 0, %s150
                  %p147 = scmp.ge.s32.totalorder %s146, 1
                  %s151 = sphi %s111, %s111
                  %s152 = sphi %s109, %s109
                $region50: #{ccdet_decode.1} parent=46 // loop_header_branch
                  %149 = sbr.rel (%p147) target = $region54
                $region51: #{ccdet_decode.1} parent=46 // loop_body
                  %v153 = vld [vmem:[%s151] sm:$0xff]
                  %154 = vst [vmem:[%s152] sm:$0xff] %v153
                  %v155 = vld [vmem:[%s151 + $0x10] sm:$0xff]
                  %156 = vst [vmem:[%s152 + $0x8] sm:$0xff] %v155
                  %v157 = vld [vmem:[%s151 + $0x20] sm:$0xff]
                  %158 = vst [vmem:[%s152 + $0x10] sm:$0xff] %v157
                  %v159 = vld [vmem:[%s151 + $0x30] sm:$0xff]
                  %160 = vst [vmem:[%s152 + $0x18] sm:$0xff] %v159
                  %v161 = vld [vmem:[%s151 + $0x40] sm:$0xff]
                  %162 = vst [vmem:[%s152 + $0x20] sm:$0xff] %v161
                  %v163 = vld [vmem:[%s151 + $0x50] sm:$0xff]
                  %164 = vst [vmem:[%s152 + $0x28] sm:$0xff] %v163
                  %v165 = vld [vmem:[%s151 + $0x60] sm:$0xff]
                  %166 = vst [vmem:[%s152 + $0x30] sm:$0xff] %v165
                  %v167 = vld [vmem:[%s151 + $0x70] sm:$0xff]
                  %168 = vst [vmem:[%s152 + $0x38] sm:$0xff] %v167
                $region52: #{ccdet_decode.1} parent=46 // loop_footer
                  %s150 = sadd.s32 1, %s146
                $region53: #{ccdet_decode.1} parent=46 // loop_footer_branch
                  %145 = sbr.rel target = $region49
                $region54: #{ccdet_decode.1} parent=46 // loop_exit
                  _
              $region47: #{ccdet_decode.1} parent=31 // pred_fallthru
                _
              // Predicated region
              $region55: #{ccdet_decode.1} parent=31 // pred_check
                _
              $region56: #{ccdet_decode.1} parent=31 // pred_check_branch
                %170 = sbr.rel target = $region58
              $region57: #{ccdet_decode.1} parent=31 // pred_region
                _
              $region58: #{ccdet_decode.1} parent=31 // pred_fallthru
                _
            $region32: #{ccdet_decode.1} parent=27 // pred_fallthru
              _
            // Predicated region
            $region33: #{ccdet_decode.1} parent=27 // pred_check
              _
            $region34: #{ccdet_decode.1} parent=27 // pred_check_branch
              %117 = sbr.rel target = $region36
            $region35: #{ccdet_decode.1} parent=27 // pred_region
              loop: start=0, step=1, limit=1
              $region37: #{ccdet_decode.1} parent=35 // loop_pre_header
                _
              $region38: #{ccdet_decode.1} parent=35 // loop_header
                %s120 = sphi 0, %s124
                %p121 = scmp.ge.s32.totalorder %s120, 1
                %s125 = sphi %s111, %s111
                %s126 = sphi %s109, %s109
              $region39: #{ccdet_decode.1} parent=35 // loop_header_branch
                %123 = sbr.rel (%p121) target = $region43
              $region40: #{ccdet_decode.1} parent=35 // loop_body
                %v127 = vld [vmem:[%s125] sm:$0xff]
                %128 = vst [vmem:[%s126] sm:$0xff] %v127
                %v129 = vld [vmem:[%s125 + $0x10] sm:$0xff]
                %130 = vst [vmem:[%s126 + $0x8] sm:$0xff] %v129
                %v131 = vld [vmem:[%s125 + $0x20] sm:$0xff]
                %132 = vst [vmem:[%s126 + $0x10] sm:$0xff] %v131
                %v133 = vld [vmem:[%s125 + $0x30] sm:$0xff]
                %134 = vst [vmem:[%s126 + $0x18] sm:$0xff] %v133
                %v135 = vld [vmem:[%s125 + $0x40] sm:$0xff]
                %136 = vst [vmem:[%s126 + $0x20] sm:$0xff] %v135
                %v137 = vld [vmem:[%s125 + $0x50] sm:$0xff]
                %138 = vst [vmem:[%s126 + $0x28] sm:$0xff] %v137
                %v139 = vld [vmem:[%s125 + $0x60] sm:$0xff]
                %140 = vst [vmem:[%s126 + $0x30] sm:$0xff] %v139
                %v141 = vld [vmem:[%s125 + $0x70] sm:$0xff]
                %142 = vst [vmem:[%s126 + $0x38] sm:$0xff] %v141
              $region41: #{ccdet_decode.1} parent=35 // loop_footer
                %s124 = sadd.s32 1, %s120
              $region42: #{ccdet_decode.1} parent=35 // loop_footer_branch
                %119 = sbr.rel target = $region38
              $region43: #{ccdet_decode.1} parent=35 // loop_exit
                _
            $region36: #{ccdet_decode.1} parent=27 // pred_fallthru
              _
          $region28: #{ccdet_decode.1} parent=23 // pred_fallthru
            _
          %171 = vnop
        $region24: #{ccdet_decode.1} parent=19 // pred_fallthru
          _
      $region20: #{ccdet_decode.1} parent=5 // pred_fallthru
        _
      %p172 = scmp.le.s32.totalorder 1, %s8
      %p173 = scmp.lt.s32.totalorder %s8, 3
      %p174 = pnand %p172, %p173
      %p175 = pneg %p174
      // Predicated region
      $region59: #{ccdet_decode.1} parent=5 // pred_check
        _
      $region60: #{ccdet_decode.1} parent=5 // pred_check_branch
        %177 = sbr.rel (%p174) target = $region62
      $region61: #{ccdet_decode.1} parent=5 // pred_region
        %s178 = ssub.s32 %s8, 1
        %s179 = sand.u32 %s21, 1
        %s180 = sand.u32 %s21, 1
        %s181 = smul.addr %s180, 64
        %s182 = scalar_lea.vmem [#allocation2], %s181
        // Predicated region
        $region63: #{ccdet_decode.1} parent=61 // pred_check
          %p183 = pneg %p34
        $region64: #{ccdet_decode.1} parent=61 // pred_check_branch
          %185 = sbr.rel (%p183) target = $region66
        $region65: #{ccdet_decode.1} parent=61 // pred_region
          _
        $region66: #{ccdet_decode.1} parent=61 // pred_fallthru
          _
        %s186 = sand.u32 %s21, 1
        %s187 = sand.u32 %s21, 1
        %s188 = smul.addr %s187, 64
        %s189 = scalar_lea.vmem [#allocation2], %s188
        %p190 = pneg %p34
        %p191 = pneg %p31
        %p192 = pneg %p55
        %p193 = pneg %p52
        %p194 = pneg %p81
        %p195 = pneg %p78
        %p196 = scmp.lt.s32.totalorder %s13, 1
        %s197 = scalar_select %p196, %s13, 1
        %s198 = smul.addr %s197, 8
        %s199 = scalar_lea.vmem %s2, %s198
        %p200 = scmp.lt.s32.totalorder %s13, 1
        %s201 = scalar_select %p200, %s13, 1
        %s202 = smul.addr %s201, 8
        %s203 = scalar_lea.vmem %s2, %s202
        %v204 = vld [vmem:[%s182] sm:$0xff]
        %v205 = vld [vmem:[%s182 + $0x8] sm:$0xff]
        %v206 = vld [vmem:[%s182 + $0x10] sm:$0xff]
        %v207 = vld [vmem:[%s182 + $0x18] sm:$0xff]
        %v208 = vld [vmem:[%s182 + $0x20] sm:$0xff]
        %v209 = vld [vmem:[%s182 + $0x28] sm:$0xff]
        %v210 = vld [vmem:[%s182 + $0x30] sm:$0xff]
        %v211 = vld [vmem:[%s182 + $0x38] sm:$0xff]
        %v212 = vld [vmem:[%s1] sm:$0xff]
        %v213 = vld [vmem:[%s1 + $0x8] sm:$0xff]
        %v214 = vld [vmem:[%s1 + $0x10] sm:$0xff]
        %v215 = vld [vmem:[%s1 + $0x18] sm:$0xff]
        %v216 = vld [vmem:[%s1 + $0x20] sm:$0xff]
        %v217 = vld [vmem:[%s1 + $0x28] sm:$0xff]
        %v218 = vld [vmem:[%s1 + $0x30] sm:$0xff]
        %v219 = vld [vmem:[%s1 + $0x38] sm:$0xff]
        %v220 = vld [vmem:[%s1 + $0x40] sm:$0xff]
        %v221 = vld [vmem:[%s1 + $0x48] sm:$0xff]
        %v222 = vld [vmem:[%s1 + $0x50] sm:$0xff]
        %v223 = vld [vmem:[%s1 + $0x58] sm:$0xff]
        %v224 = vld [vmem:[%s1 + $0x60] sm:$0xff]
        %v225 = vld [vmem:[%s1 + $0x68] sm:$0xff]
        %v226 = vld [vmem:[%s1 + $0x70] sm:$0xff]
        %v227 = vld [vmem:[%s1 + $0x78] sm:$0xff]
        %v228 = vld [vmem:[%s1 + $0x80] sm:$0xff]
        %v229 = vld [vmem:[%s1 + $0x88] sm:$0xff]
        %v230 = vld [vmem:[%s1 + $0x90] sm:$0xff]
        %v231 = vld [vmem:[%s1 + $0x98] sm:$0xff]
        %v232 = vld [vmem:[%s1 + $0xa0] sm:$0xff]
        %v233 = vld [vmem:[%s1 + $0xa8] sm:$0xff]
        %v234 = vld [vmem:[%s1 + $0xb0] sm:$0xff]
        %v235 = vld [vmem:[%s1 + $0xb8] sm:$0xff]
        %237 = vset.pattern.permute.xlu0 64
        %238 = vperm.xlu0 %237, %v212
        %v239 = vpop.permute.xlu0 %238
        %242 = vset.pattern.permute.xlu0 64
        %243 = vperm.xlu0 %242, %v213
        %v244 = vpop.permute.xlu0 %243
        %247 = vset.pattern.permute.xlu0 64
        %248 = vperm.xlu0 %247, %v214
        %v249 = vpop.permute.xlu0 %248
        %252 = vset.pattern.permute.xlu0 64
        %253 = vperm.xlu0 %252, %v215
        %v254 = vpop.permute.xlu0 %253
        %257 = vset.pattern.permute.xlu0 64
        %258 = vperm.xlu0 %257, %v216
        %v259 = vpop.permute.xlu0 %258
        %262 = vset.pattern.permute.xlu0 64
        %263 = vperm.xlu0 %262, %v217
        %v264 = vpop.permute.xlu0 %263
        %267 = vset.pattern.permute.xlu0 64
        %268 = vperm.xlu0 %267, %v218
        %v269 = vpop.permute.xlu0 %268
        %272 = vset.pattern.permute.xlu0 64
        %273 = vperm.xlu0 %272, %v219
        %v274 = vpop.permute.xlu0 %273
        %277 = vset.pattern.permute.xlu0 64
        %278 = vperm.xlu0 %277, %v220
        %v279 = vpop.permute.xlu0 %278
        %282 = vset.pattern.permute.xlu0 64
        %283 = vperm.xlu0 %282, %v221
        %v284 = vpop.permute.xlu0 %283
        %287 = vset.pattern.permute.xlu0 64
        %288 = vperm.xlu0 %287, %v222
        %v289 = vpop.permute.xlu0 %288
        %292 = vset.pattern.permute.xlu0 64
        %293 = vperm.xlu0 %292, %v223
        %v294 = vpop.permute.xlu0 %293
        %297 = vset.pattern.permute.xlu0 64
        %298 = vperm.xlu0 %297, %v224
        %v299 = vpop.permute.xlu0 %298
        %302 = vset.pattern.permute.xlu0 64
        %303 = vperm.xlu0 %302, %v225
        %v304 = vpop.permute.xlu0 %303
        %307 = vset.pattern.permute.xlu0 64
        %308 = vperm.xlu0 %307, %v226
        %v309 = vpop.permute.xlu0 %308
        %312 = vset.pattern.permute.xlu0 64
        %313 = vperm.xlu0 %312, %v227
        %v314 = vpop.permute.xlu0 %313
        %vm316 = vcmask 523264
        %v317 = vsel %vm316, %v212, 0
        %v319 = vsel %vm316, %v213, 0
        %v321 = vsel %vm316, %v214, 0
        %v323 = vsel %vm316, %v215, 0
        %v325 = vsel %vm316, %v216, 0
        %v327 = vsel %vm316, %v217, 0
        %v329 = vsel %vm316, %v218, 0
        %v331 = vsel %vm316, %v219, 0
        %v333 = vsel %vm316, %v220, 0
        %v335 = vsel %vm316, %v221, 0
        %v337 = vsel %vm316, %v222, 0
        %v339 = vsel %vm316, %v223, 0
        %v341 = vsel %vm316, %v224, 0
        %v343 = vsel %vm316, %v225, 0
        %v345 = vsel %vm316, %v226, 0
        %v347 = vsel %vm316, %v227, 0
        %349 = vmatprep.subr.mxu0 0.0
        %350 = vmatpush1.msra.mxu0 %v204
        %351 = vmatprep.subr.mxu0 0.0
        %352 = vmatpush1.msra.mxu0 %v205
        %353 = vmatprep.subr.mxu0 0.0
        %354 = vmatpush1.msra.mxu0 %v206
        %355 = vmatprep.subr.mxu0 0.0
        %356 = vmatpush1.msra.mxu0 %v207
        %357 = vmatprep.subr.mxu0 0.0
        %358 = vmatpush1.msra.mxu0 %v208
        %359 = vmatprep.subr.mxu0 0.0
        %360 = vmatpush1.msra.mxu0 %v209
        %361 = vmatprep.subr.mxu0 0.0
        %362 = vmatpush1.msra.mxu0 %v210
        %363 = vmatprep.subr.mxu0 0.0
        %364 = vmatpush1.msra.mxu0 %v211
        %365 = vmatprep.subr.mxu0 0.0
        %366 = vmatpush1.msra.mxu0 0.0
        %367 = vmatprep.subr.mxu0 0.0
        %368 = vmatpush1.msra.mxu0 0.0
        %369 = vmatprep.subr.mxu0 0.0
        %370 = vmatpush1.msra.mxu0 0.0
        %371 = vmatprep.subr.mxu0 0.0
        %372 = vmatpush1.msra.mxu0 0.0
        %373 = vmatprep.subr.mxu0 0.0
        %374 = vmatpush1.msra.mxu0 0.0
        %375 = vmatprep.subr.mxu0 0.0
        %376 = vmatpush1.msra.mxu0 0.0
        %377 = vmatprep.subr.mxu0 0.0
        %378 = vmatpush1.msra.mxu0 0.0
        %379 = vmatprep.subr.mxu0 0.0
        %380 = vmatpush1.msra.mxu0 0.0
        %381 = vmatprep.subr.mxu0 0.0
        %382 = vmatpush1.msra.mxu0 0.0
        %383 = vmatprep.subr.mxu0 0.0
        %384 = vmatpush1.msra.mxu0 0.0
        %385 = vmatprep.subr.mxu0 0.0
        %386 = vmatpush1.msra.mxu0 0.0
        %387 = vmatprep.subr.mxu0 0.0
        %388 = vmatpush1.msra.mxu0 0.0
        %389 = vmatprep.subr.mxu0 0.0
        %390 = vmatpush1.msra.mxu0 0.0
        %391 = vmatprep.subr.mxu0 0.0
        %392 = vmatpush1.msra.mxu0 0.0
        %393 = vmatprep.subr.mxu0 0.0
        %394 = vmatpush1.msra.mxu0 0.0
        %395 = vmatprep.subr.mxu0 0.0
        %396 = vmatpush1.msra.mxu0 0.0
        %397 = vmatprep.subr.mxu0 0.0
        %398 = vmatpush1.msra.mxu0 0.0
        %399 = vmatprep.subr.mxu0 0.0
        %400 = vmatpush1.msra.mxu0 0.0
        %401 = vmatprep.subr.mxu0 0.0
        %402 = vmatpush1.msra.mxu0 0.0
        %403 = vmatprep.subr.mxu0 0.0
        %404 = vmatpush1.msra.mxu0 0.0
        %405 = vmatprep.subr.mxu0 0.0
        %406 = vmatpush1.msra.mxu0 0.0
        %407 = vmatprep.subr.mxu0 0.0
        %408 = vmatpush1.msra.mxu0 0.0
        %409 = vmatprep.subr.mxu0 0.0
        %410 = vmatpush1.msra.mxu0 0.0
        %411 = vmatprep.subr.mxu0 0.0
        %412 = vmatpush1.msra.mxu0 0.0
        %413 = vmatprep.mubr.f32.mxu0 0.0
        %414 = vmatmul.mubr.f32.gmra.mrb[0].mxu0 %v317
        %v415 = vpop.f32.mrb[0].mxu0
        %v416 = vadd.f32 %v239, %v415
        %v417 = vpop.f32.mrb[0].mxu0
        %418 = vmatprep.mubr.f32.mxu0 0.0
        %419 = vmatmul.mubr.f32.gmra.mrb[0].mxu0 %v319
        %v420 = vpop.f32.mrb[0].mxu0
        %v421 = vadd.f32 %v244, %v420
        %v422 = vpop.f32.mrb[0].mxu0
        %423 = vmatprep.mubr.f32.mxu0 0.0
        %424 = vmatmul.mubr.f32.gmra.mrb[0].mxu0 %v321
        %v425 = vpop.f32.mrb[0].mxu0
        %v426 = vadd.f32 %v249, %v425
        %v427 = vpop.f32.mrb[0].mxu0
        %428 = vmatprep.mubr.f32.mxu0 0.0
        %429 = vmatmul.mubr.f32.gmra.mrb[0].mxu0 %v323
        %v430 = vpop.f32.mrb[0].mxu0
        %v431 = vadd.f32 %v254, %v430
        %v432 = vpop.f32.mrb[0].mxu0
        %433 = vmatprep.mubr.f32.mxu0 0.0
        %434 = vmatmul.mubr.f32.gmra.mrb[0].mxu0 %v325
        %v435 = vpop.f32.mrb[0].mxu0
        %v436 = vadd.f32 %v259, %v435
        %v437 = vpop.f32.mrb[0].mxu0
        %438 = vmatprep.mubr.f32.mxu0 0.0
        %439 = vmatmul.mubr.f32.gmra.mrb[0].mxu0 %v327
        %v440 = vpop.f32.mrb[0].mxu0
        %v441 = vadd.f32 %v264, %v440
        %v442 = vpop.f32.mrb[0].mxu0
        %443 = vmatprep.mubr.f32.mxu0 0.0
        %444 = vmatmul.mubr.f32.gmra.mrb[0].mxu0 %v329
        %v445 = vpop.f32.mrb[0].mxu0
        %v446 = vadd.f32 %v269, %v445
        %v447 = vpop.f32.mrb[0].mxu0
        %448 = vmatprep.mubr.f32.mxu0 0.0
        %449 = vmatmul.mubr.f32.gmra.mrb[0].mxu0 %v331
        %v450 = vpop.f32.mrb[0].mxu0
        %v451 = vadd.f32 %v274, %v450
        %v452 = vpop.f32.mrb[0].mxu0
        %453 = vmatprep.mubr.f32.mxu0 0.0
        %454 = vmatmul.mubr.f32.gmra.mrb[0].mxu0 %v333
        %v455 = vpop.f32.mrb[0].mxu0
        %v456 = vadd.f32 %v279, %v455
        %v457 = vpop.f32.mrb[0].mxu0
        %458 = vmatprep.mubr.f32.mxu0 0.0
        %459 = vmatmul.mubr.f32.gmra.mrb[0].mxu0 %v335
        %v460 = vpop.f32.mrb[0].mxu0
        %v461 = vadd.f32 %v284, %v460
        %v462 = vpop.f32.mrb[0].mxu0
        %463 = vmatprep.mubr.f32.mxu0 0.0
        %464 = vmatmul.mubr.f32.gmra.mrb[0].mxu0 %v337
        %v465 = vpop.f32.mrb[0].mxu0
        %v466 = vadd.f32 %v289, %v465
        %v467 = vpop.f32.mrb[0].mxu0
        %468 = vmatprep.mubr.f32.mxu0 0.0
        %469 = vmatmul.mubr.f32.gmra.mrb[0].mxu0 %v339
        %v470 = vpop.f32.mrb[0].mxu0
        %v471 = vadd.f32 %v294, %v470
        %v472 = vpop.f32.mrb[0].mxu0
        %473 = vmatprep.mubr.f32.mxu0 0.0
        %474 = vmatmul.mubr.f32.gmra.mrb[0].mxu0 %v341
        %v475 = vpop.f32.mrb[0].mxu0
        %v476 = vadd.f32 %v299, %v475
        %v477 = vpop.f32.mrb[0].mxu0
        %478 = vmatprep.mubr.f32.mxu0 0.0
        %479 = vmatmul.mubr.f32.gmra.mrb[0].mxu0 %v343
        %v480 = vpop.f32.mrb[0].mxu0
        %v481 = vadd.f32 %v304, %v480
        %v482 = vpop.f32.mrb[0].mxu0
        %483 = vmatprep.mubr.f32.mxu0 0.0
        %484 = vmatmul.mubr.f32.gmra.mrb[0].mxu0 %v345
        %v485 = vpop.f32.mrb[0].mxu0
        %v486 = vadd.f32 %v309, %v485
        %v487 = vpop.f32.mrb[0].mxu0
        %488 = vmatprep.mubr.f32.mxu0 0.0
        %489 = vmatmul.mubr.f32.gmra.mrb[0].mxu0 %v347
        %v490 = vpop.f32.mrb[0].mxu0
        %v491 = vadd.f32 %v314, %v490
        %v492 = vpop.f32.mrb[0].mxu0
        %493 = vdwg.mxu0
        %v494 = vmax.f32 %v416, 0.0
        %v495 = vmax.f32 %v421, 0.0
        %v496 = vmax.f32 %v426, 0.0
        %v497 = vmax.f32 %v431, 0.0
        %v498 = vmax.f32 %v436, 0.0
        %v499 = vmax.f32 %v441, 0.0
        %v500 = vmax.f32 %v446, 0.0
        %v501 = vmax.f32 %v451, 0.0
        %v502 = vmax.f32 %v456, 0.0
        %v503 = vmax.f32 %v461, 0.0
        %v504 = vmax.f32 %v466, 0.0
        %v505 = vmax.f32 %v471, 0.0
        %v506 = vmax.f32 %v476, 0.0
        %v507 = vmax.f32 %v481, 0.0
        %v508 = vmax.f32 %v486, 0.0
        %v509 = vmax.f32 %v491, 0.0
        %511 = vset.pattern.permute.xlu0 0
        %512 = vperm.xlu0 %511, %v232
        %v513 = vpop.permute.xlu0 %512
        %516 = vset.pattern.permute.xlu0 0
        %517 = vperm.xlu0 %516, %v233
        %v518 = vpop.permute.xlu0 %517
        %521 = vset.pattern.permute.xlu0 0
        %522 = vperm.xlu0 %521, %v234
        %v523 = vpop.permute.xlu0 %522
        %526 = vset.pattern.permute.xlu0 0
        %527 = vperm.xlu0 %526, %v235
        %v528 = vpop.permute.xlu0 %527
        %530 = vmatprep.subr.mxu0 0.0
        %531 = vmatpush1.msra.mxu0 %v494
        %532 = vmatprep.subr.mxu0 0.0
        %533 = vmatpush1.msra.mxu0 %v495
        %534 = vmatprep.subr.mxu0 0.0
        %535 = vmatpush1.msra.mxu0 %v496
        %536 = vmatprep.subr.mxu0 0.0
        %537 = vmatpush1.msra.mxu0 %v497
        %538 = vmatprep.subr.mxu0 0.0
        %539 = vmatpush1.msra.mxu0 %v498
        %540 = vmatprep.subr.mxu0 0.0
        %541 = vmatpush1.msra.mxu0 %v499
        %542 = vmatprep.subr.mxu0 0.0
        %543 = vmatpush1.msra.mxu0 %v500
        %544 = vmatprep.subr.mxu0 0.0
        %545 = vmatpush1.msra.mxu0 %v501
        %546 = vmatprep.subr.mxu0 0.0
        %547 = vmatpush1.msra.mxu0 %v502
        %548 = vmatprep.subr.mxu0 0.0
        %549 = vmatpush1.msra.mxu0 %v503
        %550 = vmatprep.subr.mxu0 0.0
        %551 = vmatpush1.msra.mxu0 %v504
        %552 = vmatprep.subr.mxu0 0.0
        %553 = vmatpush1.msra.mxu0 %v505
        %554 = vmatprep.subr.mxu0 0.0
        %555 = vmatpush1.msra.mxu0 %v506
        %556 = vmatprep.subr.mxu0 0.0
        %557 = vmatpush1.msra.mxu0 %v507
        %558 = vmatprep.subr.mxu0 0.0
        %559 = vmatpush1.msra.mxu0 %v508
        %560 = vmatprep.subr.mxu0 0.0
        %561 = vmatpush1.msra.mxu0 %v509
        %562 = vmatprep.subr.mxu0 0.0
        %563 = vmatpush1.msra.mxu0 0.0
        %564 = vmatprep.subr.mxu0 0.0
        %565 = vmatpush1.msra.mxu0 0.0
        %566 = vmatprep.subr.mxu0 0.0
        %567 = vmatpush1.msra.mxu0 0.0
        %568 = vmatprep.subr.mxu0 0.0
        %569 = vmatpush1.msra.mxu0 0.0
        %570 = vmatprep.subr.mxu0 0.0
        %571 = vmatpush1.msra.mxu0 0.0
        %572 = vmatprep.subr.mxu0 0.0
        %573 = vmatpush1.msra.mxu0 0.0
        %574 = vmatprep.subr.mxu0 0.0
        %575 = vmatpush1.msra.mxu0 0.0
        %576 = vmatprep.subr.mxu0 0.0
        %577 = vmatpush1.msra.mxu0 0.0
        %578 = vmatprep.subr.mxu0 0.0
        %579 = vmatpush1.msra.mxu0 0.0
        %580 = vmatprep.subr.mxu0 0.0
        %581 = vmatpush1.msra.mxu0 0.0
        %582 = vmatprep.subr.mxu0 0.0
        %583 = vmatpush1.msra.mxu0 0.0
        %584 = vmatprep.subr.mxu0 0.0
        %585 = vmatpush1.msra.mxu0 0.0
        %586 = vmatprep.subr.mxu0 0.0
        %587 = vmatpush1.msra.mxu0 0.0
        %588 = vmatprep.subr.mxu0 0.0
        %589 = vmatpush1.msra.mxu0 0.0
        %590 = vmatprep.subr.mxu0 0.0
        %591 = vmatpush1.msra.mxu0 0.0
        %592 = vmatprep.subr.mxu0 0.0
        %593 = vmatpush1.msra.mxu0 0.0
        %594 = vmatprep.mubr.f32.mxu0 0.0
        %595 = vmatmul.mubr.f32.gmra.mrb[0].mxu0 %v228
        %v596 = vpop.f32.mrb[0].mxu0
        %v597 = vadd.f32 %v513, %v596
        %v598 = vpop.f32.mrb[0].mxu0
        %599 = vmatprep.mubr.f32.mxu0 0.0
        %600 = vmatmul.mubr.f32.gmra.mrb[0].mxu0 %v229
        %v601 = vpop.f32.mrb[0].mxu0
        %v602 = vadd.f32 %v518, %v601
        %v603 = vpop.f32.mrb[0].mxu0
        %604 = vmatprep.mubr.f32.mxu0 0.0
        %605 = vmatmul.mubr.f32.gmra.mrb[0].mxu0 %v230
        %v606 = vpop.f32.mrb[0].mxu0
        %v607 = vadd.f32 %v523, %v606
        %v608 = vpop.f32.mrb[0].mxu0
        %609 = vmatprep.mubr.f32.mxu0 0.0
        %610 = vmatmul.mubr.f32.gmra.mrb[0].mxu0 %v231
        %v611 = vpop.f32.mrb[0].mxu0
        %v612 = vadd.f32 %v528, %v611
        %v613 = vpop.f32.mrb[0].mxu0
        %614 = vdwg.mxu0
        %vm615 = vcmask 1043456
        %v616 = vsel %vm615, %v607, -inf
        %v617 = vmax.f32 %v597, %v602
        %v618 = vmax.f32 %v617, %v616
        %v619 = vrot.slane %v618, 4
        %v620 = vmax.f32 %v618, %v619
        %v621 = vrot.slane %v620, 2
        %v622 = vmax.f32 %v620, %v621
        %v623 = vrot.slane %v622, 1
        %v624 = vmax.f32 %v622, %v623
        %v625 = vlaneseq
        %v626 = vshrl.u32 %v625, 7
        %v627 = vadd.s32 %v626, 8
        %v628 = vadd.s32 %v626, 16
        %vm629 = vcmp.eq.f32.partialorder %v597, %v624
        %vm630 = vcmp.eq.f32.partialorder %v602, %v624
        %vm631 = vcmp.eq.f32.partialorder %v607, %v624
        %v632 = vsel %vm629, %v626, 20
        %v633 = vsel %vm630, %v627, 20
        %v634 = vsel %vm631, %v628, 20
        %v635 = vsel %vm615, %v634, 2147483647
        %vm636 = vcmp.lt.s32.totalorder %v632, %v633
        %v637 = vsel %vm636, %v632, %v633
        %vm638 = vcmp.lt.s32.totalorder %v637, %v635
        %v639 = vsel %vm638, %v637, %v635
        %v640 = vrot.slane %v639, 4
        %vm641 = vcmp.lt.s32.totalorder %v639, %v640
        %v642 = vsel %vm641, %v639, %v640
        %v643 = vrot.slane %v642, 2
        %vm644 = vcmp.lt.s32.totalorder %v642, %v643
        %v645 = vsel %vm644, %v642, %v643
        %v646 = vrot.slane %v645, 1
        %vm647 = vcmp.lt.s32.totalorder %v645, %v646
        %v648 = vsel %vm647, %v645, %v646
        %v649 = vsub.f32 0.0, %v624
        %v650 = vmul.f32 %v649, 1.442695
        %v651 = vpow.pop %v650
        %v652 = vadd.f32 %v651, 1.0
        %v653 = vrcp.pop %v652
        %v654 = vmul.f32 1.0, %v653
        %v655 = vsub.f32 0.0, %v612
        %v656 = vmul.f32 %v655, 1.442695
        %v657 = vpow.pop %v656
        %v658 = vadd.f32 %v657, 1.0
        %v659 = vrcp.pop %v658
        %v660 = vmul.f32 1.0, %v659
        %v661 = vmul.f32 %v654, %v660
        %v662 = vrsqrt.pop %v661
        %v663 = vmul.f32 %v661, %v662
        %vm664 = vcmp.eq.f32.partialorder %v661, inf
        %v665 = vsel %vm664, %v661, %v663
        %vm666 = vcmp.eq.f32.partialorder %v661, 0.0
        %v667 = vand.u32 %v661, 2147483648
        %v668 = vsel %vm666, %v667, %v665
        %v669 = vmin.f32 %v607, 6.9077554
        %v670 = vmul.f32 %v669, 1.442695
        %v671 = vpow.pop %v670
        %v672 = vlaneseq
        %v673 = vand.u32 %v672, 127
        %s674 = smul.u32 %s13, 128
        %v675 = vstv %s674
        %v676 = vadd.s32 %v675, %v673
        %v677 = vand.u32 %v676, 15
        %v678 = vcvt.s32.f32 %v677
        %v679 = vshra.s32 %v676, 4
        %v680 = vcvt.s32.f32 %v679
        %v681 = vsub.f32 %v678, %v671
        %v682 = vsub.f32 %v680, %v671
        %v683 = vadd.f32 %v678, %v671
        %v684 = vadd.f32 %v680, %v671
        %v686 = vrot.slane %v681, 4
        %v689 = vrot.slane %v682, 4
        %v692 = vrot.slane %v683, 4
        %v695 = vrot.slane %v684, 4
        %vm697 = vcmask 1040384
        %v698 = vsel %vm697, %v686, %v689
        %vm699 = vcmask 1041408
        %v700 = vsel %vm699, %v698, %v692
        %vm701 = vcmask 1042432
        %v702 = vsel %vm701, %v700, %v695
        %v703 = vmul.f32 %v702, 0.0625
        %v704 = vmax.f32 %v703, 0.0
        %v705 = vmin.f32 %v704, 1.0
        %v706 = vcvt.s32.f32 %v648
        %v708 = vrot.slane %v705, 6
        %v710 = vsel %vm697, %v668, %v706
        %v711 = vsel %vm699, %v710, %v708
        %vm712 = vcmask 1045504
        %v713 = vsel %vm712, %v711, 0.0
        %714 = vst [vmem:[%s203] sm:$0xff] %v713
        %p715 = scmp.lt.s32.totalorder %s13, 1
        %s716 = scalar_select %p715, %s13, 1
        %s717 = smul.addr %s716, 8
        %s718 = scalar_lea.vmem %s2, %s717
        // Predicated region
        $region67: #{ccdet_decode.1} parent=61 // pred_check
          %p719 = pneg %p78
        $region68: #{ccdet_decode.1} parent=61 // pred_check_branch
          %721 = sbr.rel (%p719) target = $region70
        $region69: #{ccdet_decode.1} parent=61 // pred_region
          _
        $region70: #{ccdet_decode.1} parent=61 // pred_fallthru
          _
      $region62: #{ccdet_decode.1} parent=5 // pred_fallthru
        _
      %p722 = scmp.le.s32.totalorder 2, %s8
      // Predicated region
      $region71: #{ccdet_decode.1} parent=5 // pred_check
        %p723 = pneg %p722
      $region72: #{ccdet_decode.1} parent=5 // pred_check_branch
        %725 = sbr.rel (%p723) target = $region74
      $region73: #{ccdet_decode.1} parent=5 // pred_region
        %s726 = ssub.s32 %s8, 2
        // Predicated region
        $region75: #{ccdet_decode.1} parent=73 // pred_check
          %p727 = pneg %p84
        $region76: #{ccdet_decode.1} parent=73 // pred_check_branch
          %729 = sbr.rel (%p727) target = $region78
        $region77: #{ccdet_decode.1} parent=73 // pred_region
          %p730 = scmp.lt.s32.totalorder %s14, 1
          %s731 = scalar_select %p730, %s14, 1
          %s732 = smul.addr %s731, 8
          %s733 = scalar_lea.vmem %s2, %s732
        $region78: #{ccdet_decode.1} parent=73 // pred_fallthru
          _
      $region74: #{ccdet_decode.1} parent=5 // pred_fallthru
        _
    $region6: #{ccdet_decode.1} parent=1 // loop_footer
      %s12 = sadd.s32 1, %s8
    $region7: #{ccdet_decode.1} parent=1 // loop_footer_branch
      %7 = sbr.rel target = $region3
    $region8: #{ccdet_decode.1} parent=1 // loop_exit
      _

</llo_original>
